<compile_context>
chip_gen: v5e
topology: v5e:2x2
jax: 0.10.0
libtpu: 0.0.40
codegen_flags: <defaults>
</compile_context>

<pallas_src>
import functools

import jax
import jax.numpy as jnp
import numpy as np
from jax.experimental import pallas as pl
from jax.experimental.pallas import tpu as pltpu


def _chip_caps():
    """(VMEM capacity bytes, MXU-vs-VPU pointwise channel threshold) per chip gen."""
    kind = ""
    try:
        kind = (jax.devices()[0].device_kind or "").lower()
    except Exception:
        pass
    if any(g in kind for g in ("v4", "v5", "v6")):
        vmem_cap = 128 << 20          # v4/v5e/v5p/v6e: 128 MiB VMEM per TensorCore
    else:
        vmem_cap = 64 << 20           # v7x (and conservative default): 64 MiB
    mxu_threshold = 32 if "v5" in kind else 64  # v5e MXU is 128x128 -> lower cutoff
    return vmem_cap, mxu_threshold


def _step_vmem_bytes(tile_h, W, Cin, Cout, pad, itemsize):
    """Rough per-grid-step VMEM footprint (double-buffered blocks + scratch + temps)."""
    n = tile_h * W
    halo = pad * W
    hblk = 128 * ((halo + 127) // 128)
    if n % hblk != 0:
        hblk = n
    e = n + 2 * halo + 2 * pad
    in_b = 2 * itemsize * Cin * (n + 2 * hblk)        # x tile + 2 halo blocks, 2-deep
    out_b = 2 * itemsize * Cout * n
    scratch = 4 * Cout * e                            # fp32 padded pointwise scratch
    temps = 4 * (Cin + Cout) * (n + 2 * halo) + 4 * 2 * Cout * n
    return in_b + out_b + scratch + temps


def _pick_tile_h(H, W, Cin, Cout, pad, itemsize, budget, batch):
    """Largest lane-dense row tile that fits the VMEM budget; prefer keeping >= 8
    grid steps alive for pipelining / megacore sharding."""
    lane_dense = [t for t in range(max(pad, 1), H + 1)
                  if H % t == 0 and (t * W) % 128 == 0]
    if not lane_dense:
        return H                      # awkward shape: whole image per grid step
    fitting = [t for t in lane_dense
               if _step_vmem_bytes(t, W, Cin, Cout, pad, itemsize) <= budget]
    if not fitting:
        return min(lane_dense)
    deep = [t for t in fitting if batch * (H // t) >= 8]
    return max(deep) if deep else max(fitting)


def _bsconv_fused_kernel(*refs, W, K, pad, HALO, HBLK, use_mxu, multi):
    if multi:
        (x_ref, xt_ref, xb_ref, wpw_ref, wdw_ref, b_ref, mask_ref,
         o_ref, ext_ref) = refs
    else:
        x_ref, wpw_ref, wdw_ref, b_ref, mask_ref, o_ref, ext_ref = refs

    r = pl.program_id(1)
    n_r = pl.num_programs(1)
    Cout, N = o_ref.shape[1], o_ref.shape[2]
    f32 = jnp.float32

    # ---- stage 1: pointwise 1x1 conv over the haloed tile, ONE fused dot ------
    x_mid = x_ref[0]                                       # (Cin, N)
    if multi:
        # Halo rows: last `pad` rows of the previous tile / first `pad` rows of
        # the next tile, carved out of one 128-lane-aligned neighbour block each.
        x_top = xt_ref[0][:, HBLK - HALO:]                 # (Cin, HALO)
        x_bot = xb_ref[0][:, :HALO]                        # (Cin, HALO)
        # Image-border zero padding: tiny (Cin, HALO) selects, not full-tile ones.
        x_top = jnp.where(r == 0, jnp.zeros_like(x_top), x_top)
        x_bot = jnp.where(r == n_r - 1, jnp.zeros_like(x_bot), x_bot)
    else:
        x_top = jnp.zeros((x_mid.shape[0], HALO), x_mid.dtype)
        x_bot = jnp.zeros((x_mid.shape[0], HALO), x_mid.dtype)
    x_ext = jnp.concatenate([x_top, x_mid, x_bot], axis=-1)   # (Cin, N + 2*HALO)

    wpw = wpw_ref[...]                                     # native dtype (bf16 ok)
    if use_mxu:
        # bf16 x bf16 -> f32 runs natively on the MXU; f32 inputs also fine.
        y_ext = jnp.dot(wpw, x_ext, preferred_element_type=f32)
    else:
        # Tiny channel counts: VPU broadcast-MAC beats a <1%-occupancy MXU dot.
        cin = x_ext.shape[0]
        y_ext = jnp.zeros((Cout, x_ext.shape[-1]), f32)
        for ci in range(cin):
            y_ext = y_ext + (wpw[:, ci:ci + 1].astype(f32)
                             * x_ext[ci:ci + 1, :].astype(f32))

    # One staged store into the padded scratch.  Lanes [0, pad) and [E-pad, E)
    # are never written: every tap that reads them is select-masked below, so
    # their (stale) contents are dead.
    ext_ref[:, pad:pad + N + 2 * HALO] = y_ext

    # ---- stage 2: depthwise KxK conv + bias (VPU MACs on lane-shifted taps) ----
    wdw = wdw_ref[...].astype(f32)                         # (Cout, K*K)
    col_ok = mask_ref[...] > 0.5                           # (2*pad, N), resident input
    acc = jnp.zeros((Cout, N), f32)
    for kh in range(K):                                    # statically unrolled taps
        for kw in range(K):
            s = kh * W + kw                                # static lane offset, >= 0
            tap = ext_ref[:, s:s + N]
            dw = kw - pad
            if dw != 0:                                    # W-border zero padding
                m = dw + pad if dw < 0 else dw + pad - 1
                tap = jnp.where(col_ok[m:m + 1, :], tap, 0.0)
            acc = acc + tap * wdw[:, kh * K + kw:kh * K + kw + 1]
    acc = acc + b_ref[...].astype(f32)
    o_ref[0] = acc.astype(o_ref.dtype)


def bsconvu_forward(x_nchw, w_pw, w_dw, bias=None, *, padding=1, stride=1,
                    dilation=1, tile_h=None):
    """BSConvU.forward: x (B,Cin,H,W), w_pw (Cout,Cin,1,1), w_dw (Cout,1,K,K),
    bias (Cout,) -> (B,Cout,H,W)."""
    assert stride == 1 and dilation == 1, \
        "TODO(synk): stride>1 / dilation>1 variants not implemented"
    B, Cin, H, W = x_nchw.shape
    Cout = w_pw.shape[0]
    K = w_dw.shape[2]
    pad = padding
    assert pad == K // 2 and pad >= 1, \
        "TODO(synk): only 'same' zero padding with kernel_size>=3 implemented"

    dtype = x_nchw.dtype
    itemsize = np.dtype(dtype).itemsize

    # Layout plumbing is metadata-only: NCHW -> (B, C, H*W). No transposes/pads.
    x_flat = x_nchw.reshape(B, Cin, H * W)
    wpw = w_pw[:, :, 0, 0].astype(dtype)          # (Cout, Cin)
    wdw = w_dw[:, 0, :, :].reshape(Cout, K * K)   # (Cout, K*K), tap index kh*K+kw
    b2 = (bias if bias is not None
          else jnp.zeros((Cout,), dtype)).reshape(Cout, 1)

    vmem_cap, mxu_thr = _chip_caps()
    tile_budget = (14 << 20) if vmem_cap <= (64 << 20) else (28 << 20)
    if tile_h is None:
        TILE_H = _pick_tile_h(H, W, Cin, Cout, pad, itemsize, tile_budget, B)
    else:
        TILE_H = int(tile_h)
        assert H % TILE_H == 0 and TILE_H >= pad
    n_r = H // TILE_H
    N = TILE_H * W
    HALO = pad * W
    HBLK = 128 * ((HALO + 127) // 128)            # minimal lane-aligned halo block
    if N % HBLK != 0:
        HBLK = N                                  # fallback: whole neighbour tile
    RB = N // HBLK
    TOT = (H * W) // HBLK
    E = N + 2 * HALO + 2 * pad                    # padded f32 scratch lanes
    multi = n_r > 1

    use_mxu = min(Cin, Cout) >= mxu_thr           # v5e: 32, v6e/v7x: 64

    # Precomputed 0/1 column-validity mask (one row per dw != 0), resident in VMEM.
    col = np.arange(N) % W
    mrows = [((col + dw >= 0) & (col + dw < W)).astype(np.float32)
             for dw in range(-pad, pad + 1) if dw != 0]
    mask = jnp.asarray(np.stack(mrows, axis=0))   # (2*pad, N)

    kernel = functools.partial(_bsconv_fused_kernel, W=W, K=K, pad=pad,
                               HALO=HALO, HBLK=HBLK, use_mxu=use_mxu, multi=multi)

    x_specs = [pl.BlockSpec((1, Cin, N), lambda b, r: (b, 0, r))]
    x_args = [x_flat]
    if multi:
        # NOTE: on v5e, if DMA latency is still exposed after these fixes,
        # pipeline_mode=pl.Buffered(3) on the input specs is the next knob to sweep.
        x_specs += [
            pl.BlockSpec((1, Cin, HBLK),
                         lambda b, r: (b, 0, jnp.maximum(r * RB - 1, 0))),
            pl.BlockSpec((1, Cin, HBLK),
                         lambda b, r: (b, 0, jnp.minimum((r + 1) * RB, TOT - 1))),
        ]
        x_args += [x_flat, x_flat]
    in_specs = x_specs + [
        pl.BlockSpec((Cout, Cin), lambda b, r: (0, 0)),     # pw weight (resident)
        pl.BlockSpec((Cout, K * K), lambda b, r: (0, 0)),   # dw weight (resident)
        pl.BlockSpec((Cout, 1), lambda b, r: (0, 0)),       # dw bias   (resident)
        pl.BlockSpec((2 * pad, N), lambda b, r: (0, 0)),    # column mask (resident)
    ]

    step_bytes = _step_vmem_bytes(TILE_H, W, Cin, Cout, pad, itemsize)
    # Never request more scoped VMEM than the chip has (64 MiB on v7x).
    vmem_limit = int(min(max(2 * step_bytes + (2 << 20), 8 << 20),
                         (vmem_cap * 3) // 4))

    flops = 2 * B * Cout * (Cin * (H * W + (n_r * 2 * HALO if multi else 0))
                            + H * W * K * K)
    bytes_accessed = itemsize * (
        B * Cin * (H * W + (n_r * 2 * HBLK if multi else 0))   # input + halo rereads
        + B * Cout * H * W                                     # output
        + wpw.size + wdw.size + b2.size) + 4 * mask.size

    out_flat = pl.pallas_call(
        kernel,
        out_shape=jax.ShapeDtypeStruct((B, Cout, H * W), dtype),
        grid_spec=pltpu.PrefetchScalarGridSpec(
            num_scalar_prefetch=0,
            grid=(B, n_r),
            in_specs=in_specs,
            out_specs=pl.BlockSpec((1, Cout, N), lambda b, r: (b, 0, r)),
            scratch_shapes=[pltpu.VMEM((Cout, E), jnp.float32)],
        ),
        compiler_params=pltpu.CompilerParams(
            dimension_semantics=("parallel", "parallel"),
            vmem_limit_bytes=vmem_limit),
        cost_estimate=pl.CostEstimate(flops=int(flops), transcendentals=0,
                                      bytes_accessed=int(bytes_accessed)),
    )(*x_args, wpw, wdw, b2, mask)

    return out_flat.reshape(B, Cout, H, W)


def _ref_forward(x, w_pw, w_dw, bias, padding=1):
    """Pure-JAX reference (mirrors the PyTorch module), computed in f32."""
    Cout = w_pw.shape[0]
    f32 = jnp.float32
    y = jax.lax.conv_general_dilated(
        x.astype(f32), w_pw.astype(f32), window_strides=(1, 1), padding="VALID",
        dimension_numbers=("NCHW", "OIHW", "NCHW"),
        precision=jax.lax.Precision.HIGHEST)
    z = jax.lax.conv_general_dilated(
        y, w_dw.astype(f32), window_strides=(1, 1),
        padding=((padding, padding), (padding, padding)),
        dimension_numbers=("NCHW", "OIHW", "NCHW"),
        feature_group_count=Cout, precision=jax.lax.Precision.HIGHEST)
    return z + bias.astype(f32).reshape(1, Cout, 1, 1)


if __name__ == "__main__":
    key = jax.random.PRNGKey(0)
    k1, k2, k3, k4 = jax.random.split(key, 4)

    # Module-default config: kernel_size=3, stride=1, padding=1 (tiny shapes).
    B, Cin, Cout, H, W, K = 2, 4, 8, 16, 16, 3
    x = jax.random.normal(k1, (B, Cin, H, W), jnp.float32)
    w_pw = jax.random.normal(k2, (Cout, Cin, 1, 1), jnp.float32) * 0.5
    w_dw = jax.random.normal(k3, (Cout, 1, K, K), jnp.float32) * 0.5
    bias = jax.random.normal(k4, (Cout,), jnp.float32)
    ref = _ref_forward(x, w_pw, w_dw, bias, padding=1)

    # 1) default tiling (single row tile per image -> halo streams elided)
    out = jax.block_until_ready(bsconvu_forward(x, w_pw, w_dw, bias, padding=1))
    np.testing.assert_allclose(np.asarray(out), np.asarray(ref),
                               atol=1e-4, rtol=1e-4)

    # 2) forced 8-row tiles -> exercises the neighbour-halo / boundary-mask path
    out2 = jax.block_until_ready(
        bsconvu_forward(x, w_pw, w_dw, bias, padding=1, tile_h=8))
    np.testing.assert_allclose(np.asarray(out2), np.asarray(ref),
                               atol=1e-4, rtol=1e-4)

    # 3) wider channels in bf16 -> MXU pointwise path with native bf16 operands
    #    (loose tolerance: bf16 storage + MXU bf16 accumulation vs f32 reference)
    C2 = 64
    xb = jax.random.normal(k1, (2, C2, H, W), jnp.float32).astype(jnp.bfloat16)
    wpb = (jax.random.normal(k2, (C2, C2, 1, 1), jnp.float32) * 0.125
           ).astype(jnp.bfloat16)
    wdb = (jax.random.normal(k3, (C2, 1, K, K), jnp.float32) * 0.5
           ).astype(jnp.bfloat16)
    bb = jax.random.normal(k4, (C2,), jnp.float32).astype(jnp.bfloat16)
    refb = _ref_forward(xb, wpb, wdb, bb, padding=1)
    outb = jax.block_until_ready(bsconvu_forward(xb, wpb, wdb, bb, padding=1))
    np.testing.assert_allclose(np.asarray(outb.astype(jnp.float32)),
                               np.asarray(refb), atol=0.25, rtol=0.05)

    print("KERNEL_OK")
</pallas_src>

<mosaic_0001>
module attributes {stable_mosaic.version = 11 : i64} {
  func.func @_bsconv_fused_kernel(%arg0: i32, %arg1: i32, %arg2: memref<1x4x256xf32, #tpu.memory_space<vmem>>, %arg3: memref<8x4xf32, #tpu.memory_space<vmem>>, %arg4: memref<8x9xf32, #tpu.memory_space<vmem>>, %arg5: memref<8x1xf32, #tpu.memory_space<vmem>>, %arg6: memref<2x256xf32, #tpu.memory_space<vmem>>, %arg7: memref<1x8x256xf32, #tpu.memory_space<vmem>>, %arg8: memref<8x290xf32, #tpu.memory_space<vmem>>) attributes {dimension_semantics = [#tpu.dimension_semantics<parallel>, #tpu.dimension_semantics<parallel>], iteration_bounds = array<i64: 2, 1>, scalar_prefetch = 0 : i64, scratch_operands = 1 : i64, tpu.core_type = #tpu.core_type<tc>, window_params = [{transform_indices = @transform_0, window_bounds = array<i64: 1, 4, 256>}, {pipeline_mode = #tpu.pipeline_mode<synchronous>, transform_indices = @transform_1, window_bounds = array<i64: 8, 4>}, {pipeline_mode = #tpu.pipeline_mode<synchronous>, transform_indices = @transform_2, window_bounds = array<i64: 8, 9>}, {pipeline_mode = #tpu.pipeline_mode<synchronous>, transform_indices = @transform_3, window_bounds = array<i64: 8, 1>}, {pipeline_mode = #tpu.pipeline_mode<synchronous>, transform_indices = @transform_4, window_bounds = array<i64: 2, 256>}, {transform_indices = @transform_5, window_bounds = array<i64: 1, 8, 256>}]} {
    %c0 = arith.constant 0 : index
    %c0_0 = arith.constant 0 : index
    %c0_1 = arith.constant 0 : index
    %0 = vector.load %arg2[%c0, %c0_0, %c0_1] : memref<1x4x256xf32, #tpu.memory_space<vmem>>, vector<1x4x256xf32>
    %1 = vector.shape_cast %0 : vector<1x4x256xf32> to vector<4x256xf32>
    %cst = arith.constant 0.000000e+00 : f32
    %2 = vector.broadcast %cst : f32 to vector<4x16xf32>
    %cst_2 = arith.constant 0.000000e+00 : f32
    %3 = vector.broadcast %cst_2 : f32 to vector<4x16xf32>
    %4 = tpu.concatenate %2, %1, %3 in 1 : vector<4x16xf32>, vector<4x256xf32>, vector<4x16xf32> -> vector<4x288xf32>
    %c0_3 = arith.constant 0 : index
    %c0_4 = arith.constant 0 : index
    %5 = vector.load %arg3[%c0_3, %c0_4] : memref<8x4xf32, #tpu.memory_space<vmem>>, vector<8x4xf32>
    %cst_5 = arith.constant 0.000000e+00 : f32
    %6 = vector.broadcast %cst_5 : f32 to vector<8x288xf32>
    %7 = vector.extract_strided_slice %5 {offsets = [0, 0], sizes = [8, 1], strides = [1, 1]} : vector<8x4xf32> to vector<8x1xf32>
    %8 = vector.extract_strided_slice %4 {offsets = [0, 0], sizes = [1, 288], strides = [1, 1]} : vector<4x288xf32> to vector<1x288xf32>
    %9 = vector.broadcast %7 : vector<8x1xf32> to vector<8x288xf32>
    %10 = vector.broadcast %8 : vector<1x288xf32> to vector<8x288xf32>
    %11 = arith.mulf %9, %10 : vector<8x288xf32>
    %12 = arith.addf %6, %11 : vector<8x288xf32>
    %13 = vector.extract_strided_slice %5 {offsets = [0, 1], sizes = [8, 1], strides = [1, 1]} : vector<8x4xf32> to vector<8x1xf32>
    %14 = vector.extract_strided_slice %4 {offsets = [1, 0], sizes = [1, 288], strides = [1, 1]} : vector<4x288xf32> to vector<1x288xf32>
    %15 = vector.broadcast %13 : vector<8x1xf32> to vector<8x288xf32>
    %16 = vector.broadcast %14 : vector<1x288xf32> to vector<8x288xf32>
    %17 = arith.mulf %15, %16 : vector<8x288xf32>
    %18 = arith.addf %12, %17 : vector<8x288xf32>
    %19 = vector.extract_strided_slice %5 {offsets = [0, 2], sizes = [8, 1], strides = [1, 1]} : vector<8x4xf32> to vector<8x1xf32>
    %20 = vector.extract_strided_slice %4 {offsets = [2, 0], sizes = [1, 288], strides = [1, 1]} : vector<4x288xf32> to vector<1x288xf32>
    %21 = vector.broadcast %19 : vector<8x1xf32> to vector<8x288xf32>
    %22 = vector.broadcast %20 : vector<1x288xf32> to vector<8x288xf32>
    %23 = arith.mulf %21, %22 : vector<8x288xf32>
    %24 = arith.addf %18, %23 : vector<8x288xf32>
    %25 = vector.extract_strided_slice %5 {offsets = [0, 3], sizes = [8, 1], strides = [1, 1]} : vector<8x4xf32> to vector<8x1xf32>
    %26 = vector.extract_strided_slice %4 {offsets = [3, 0], sizes = [1, 288], strides = [1, 1]} : vector<4x288xf32> to vector<1x288xf32>
    %27 = vector.broadcast %25 : vector<8x1xf32> to vector<8x288xf32>
    %28 = vector.broadcast %26 : vector<1x288xf32> to vector<8x288xf32>
    %29 = arith.mulf %27, %28 : vector<8x288xf32>
    %30 = arith.addf %24, %29 : vector<8x288xf32>
    %c0_6 = arith.constant 0 : index
    %c1 = arith.constant 1 : index
    %31 = vector.load %arg8[%c0_6, %c1] : memref<8x290xf32, #tpu.memory_space<vmem>>, vector<8x288xf32>
    tpu.vector_store %arg8[%c0_6, %c1], %30 {strides = array<i32>} : memref<8x290xf32, #tpu.memory_space<vmem>>, vector<8x288xf32>,
    %c0_7 = arith.constant 0 : index
    %c0_8 = arith.constant 0 : index
    %32 = vector.load %arg4[%c0_7, %c0_8] : memref<8x9xf32, #tpu.memory_space<vmem>>, vector<8x9xf32>
    %c0_9 = arith.constant 0 : index
    %c0_10 = arith.constant 0 : index
    %33 = vector.load %arg6[%c0_9, %c0_10] : memref<2x256xf32, #tpu.memory_space<vmem>>, vector<2x256xf32>
    %cst_11 = arith.constant 5.000000e-01 : f32
    %34 = vector.broadcast %cst_11 : f32 to vector<2x256xf32>
    %35 = arith.cmpf ogt, %33, %34 : vector<2x256xf32>
    %cst_12 = arith.constant 0.000000e+00 : f32
    %36 = vector.broadcast %cst_12 : f32 to vector<8x256xf32>
    %c0_13 = arith.constant 0 : index
    %c0_14 = arith.constant 0 : index
    %37 = vector.load %arg8[%c0_13, %c0_14] : memref<8x290xf32, #tpu.memory_space<vmem>>, vector<8x256xf32>
    %38 = vector.extract_strided_slice %35 {offsets = [0, 0], sizes = [1, 256], strides = [1, 1]} : vector<2x256xi1> to vector<1x256xi1>
    %cst_15 = arith.constant 0.000000e+00 : f32
    %39 = vector.shape_cast %38 : vector<1x256xi1> to vector<1x256xi1>
    %40 = vector.broadcast %39 : vector<1x256xi1> to vector<8x256xi1>
    %41 = vector.broadcast %cst_15 : f32 to vector<8x256xf32>
    %42 = arith.select %40, %37, %41 : vector<8x256xi1>, vector<8x256xf32>
    %43 = vector.extract_strided_slice %32 {offsets = [0, 0], sizes = [8, 1], strides = [1, 1]} : vector<8x9xf32> to vector<8x1xf32>
    %44 = vector.broadcast %43 : vector<8x1xf32> to vector<8x256xf32>
    %45 = arith.mulf %42, %44 : vector<8x256xf32>
    %46 = arith.addf %36, %45 : vector<8x256xf32>
    %c0_16 = arith.constant 0 : index
    %c1_17 = arith.constant 1 : index
    %47 = vector.load %arg8[%c0_16, %c1_17] : memref<8x290xf32, #tpu.memory_space<vmem>>, vector<8x256xf32>
    %48 = vector.extract_strided_slice %32 {offsets = [0, 1], sizes = [8, 1], strides = [1, 1]} : vector<8x9xf32> to vector<8x1xf32>
    %49 = vector.broadcast %48 : vector<8x1xf32> to vector<8x256xf32>
    %50 = arith.mulf %47, %49 : vector<8x256xf32>
    %51 = arith.addf %46, %50 : vector<8x256xf32>
    %c0_18 = arith.constant 0 : index
    %c2 = arith.constant 2 : index
    %52 = vector.load %arg8[%c0_18, %c2] : memref<8x290xf32, #tpu.memory_space<vmem>>, vector<8x256xf32>
    %53 = vector.extract_strided_slice %35 {offsets = [1, 0], sizes = [1, 256], strides = [1, 1]} : vector<2x256xi1> to vector<1x256xi1>
    %cst_19 = arith.constant 0.000000e+00 : f32
    %54 = vector.shape_cast %53 : vector<1x256xi1> to vector<1x256xi1>
    %55 = vector.broadcast %54 : vector<1x256xi1> to vector<8x256xi1>
    %56 = vector.broadcast %cst_19 : f32 to vector<8x256xf32>
    %57 = arith.select %55, %52, %56 : vector<8x256xi1>, vector<8x256xf32>
    %58 = vector.extract_strided_slice %32 {offsets = [0, 2], sizes = [8, 1], strides = [1, 1]} : vector<8x9xf32> to vector<8x1xf32>
    %59 = vector.broadcast %58 : vector<8x1xf32> to vector<8x256xf32>
    %60 = arith.mulf %57, %59 : vector<8x256xf32>
    %61 = arith.addf %51, %60 : vector<8x256xf32>
    %c0_20 = arith.constant 0 : index
    %c16 = arith.constant 16 : index
    %62 = vector.load %arg8[%c0_20, %c16] : memref<8x290xf32, #tpu.memory_space<vmem>>, vector<8x256xf32>
    %63 = vector.extract_strided_slice %35 {offsets = [0, 0], sizes = [1, 256], strides = [1, 1]} : vector<2x256xi1> to vector<1x256xi1>
    %cst_21 = arith.constant 0.000000e+00 : f32
    %64 = vector.shape_cast %63 : vector<1x256xi1> to vector<1x256xi1>
    %65 = vector.broadcast %64 : vector<1x256xi1> to vector<8x256xi1>
    %66 = vector.broadcast %cst_21 : f32 to vector<8x256xf32>
    %67 = arith.select %65, %62, %66 : vector<8x256xi1>, vector<8x256xf32>
    %68 = vector.extract_strided_slice %32 {offsets = [0, 3], sizes = [8, 1], strides = [1, 1]} : vector<8x9xf32> to vector<8x1xf32>
    %69 = vector.broadcast %68 : vector<8x1xf32> to vector<8x256xf32>
    %70 = arith.mulf %67, %69 : vector<8x256xf32>
    %71 = arith.addf %61, %70 : vector<8x256xf32>
    %c0_22 = arith.constant 0 : index
    %c17 = arith.constant 17 : index
    %72 = vector.load %arg8[%c0_22, %c17] : memref<8x290xf32, #tpu.memory_space<vmem>>, vector<8x256xf32>
    %73 = vector.extract_strided_slice %32 {offsets = [0, 4], sizes = [8, 1], strides = [1, 1]} : vector<8x9xf32> to vector<8x1xf32>
    %74 = vector.broadcast %73 : vector<8x1xf32> to vector<8x256xf32>
    %75 = arith.mulf %72, %74 : vector<8x256xf32>
    %76 = arith.addf %71, %75 : vector<8x256xf32>
    %c0_23 = arith.constant 0 : index
    %c18 = arith.constant 18 : index
    %77 = vector.load %arg8[%c0_23, %c18] : memref<8x290xf32, #tpu.memory_space<vmem>>, vector<8x256xf32>
    %78 = vector.extract_strided_slice %35 {offsets = [1, 0], sizes = [1, 256], strides = [1, 1]} : vector<2x256xi1> to vector<1x256xi1>
    %cst_24 = arith.constant 0.000000e+00 : f32
    %79 = vector.shape_cast %78 : vector<1x256xi1> to vector<1x256xi1>
    %80 = vector.broadcast %79 : vector<1x256xi1> to vector<8x256xi1>
    %81 = vector.broadcast %cst_24 : f32 to vector<8x256xf32>
    %82 = arith.select %80, %77, %81 : vector<8x256xi1>, vector<8x256xf32>
    %83 = vector.extract_strided_slice %32 {offsets = [0, 5], sizes = [8, 1], strides = [1, 1]} : vector<8x9xf32> to vector<8x1xf32>
    %84 = vector.broadcast %83 : vector<8x1xf32> to vector<8x256xf32>
    %85 = arith.mulf %82, %84 : vector<8x256xf32>
    %86 = arith.addf %76, %85 : vector<8x256xf32>
    %c0_25 = arith.constant 0 : index
    %c32 = arith.constant 32 : index
    %87 = vector.load %arg8[%c0_25, %c32] : memref<8x290xf32, #tpu.memory_space<vmem>>, vector<8x256xf32>
    %88 = vector.extract_strided_slice %35 {offsets = [0, 0], sizes = [1, 256], strides = [1, 1]} : vector<2x256xi1> to vector<1x256xi1>
    %cst_26 = arith.constant 0.000000e+00 : f32
    %89 = vector.shape_cast %88 : vector<1x256xi1> to vector<1x256xi1>
    %90 = vector.broadcast %89 : vector<1x256xi1> to vector<8x256xi1>
    %91 = vector.broadcast %cst_26 : f32 to vector<8x256xf32>
    %92 = arith.select %90, %87, %91 : vector<8x256xi1>, vector<8x256xf32>
    %93 = vector.extract_strided_slice %32 {offsets = [0, 6], sizes = [8, 1], strides = [1, 1]} : vector<8x9xf32> to vector<8x1xf32>
    %94 = vector.broadcast %93 : vector<8x1xf32> to vector<8x256xf32>
    %95 = arith.mulf %92, %94 : vector<8x256xf32>
    %96 = arith.addf %86, %95 : vector<8x256xf32>
    %c0_27 = arith.constant 0 : index
    %c33 = arith.constant 33 : index
    %97 = vector.load %arg8[%c0_27, %c33] : memref<8x290xf32, #tpu.memory_space<vmem>>, vector<8x256xf32>
    %98 = vector.extract_strided_slice %32 {offsets = [0, 7], sizes = [8, 1], strides = [1, 1]} : vector<8x9xf32> to vector<8x1xf32>
    %99 = vector.broadcast %98 : vector<8x1xf32> to vector<8x256xf32>
    %100 = arith.mulf %97, %99 : vector<8x256xf32>
    %101 = arith.addf %96, %100 : vector<8x256xf32>
    %c0_28 = arith.constant 0 : index
    %c34 = arith.constant 34 : index
    %102 = vector.load %arg8[%c0_28, %c34] : memref<8x290xf32, #tpu.memory_space<vmem>>, vector<8x256xf32>
    %103 = vector.extract_strided_slice %35 {offsets = [1, 0], sizes = [1, 256], strides = [1, 1]} : vector<2x256xi1> to vector<1x256xi1>
    %cst_29 = arith.constant 0.000000e+00 : f32
    %104 = vector.shape_cast %103 : vector<1x256xi1> to vector<1x256xi1>
    %105 = vector.broadcast %104 : vector<1x256xi1> to vector<8x256xi1>
    %106 = vector.broadcast %cst_29 : f32 to vector<8x256xf32>
    %107 = arith.select %105, %102, %106 : vector<8x256xi1>, vector<8x256xf32>
    %108 = vector.extract_strided_slice %32 {offsets = [0, 8], sizes = [8, 1], strides = [1, 1]} : vector<8x9xf32> to vector<8x1xf32>
    %109 = vector.broadcast %108 : vector<8x1xf32> to vector<8x256xf32>
    %110 = arith.mulf %107, %109 : vector<8x256xf32>
    %111 = arith.addf %101, %110 : vector<8x256xf32>
    %c0_30 = arith.constant 0 : index
    %c0_31 = arith.constant 0 : index
    %112 = vector.load %arg5[%c0_30, %c0_31] : memref<8x1xf32, #tpu.memory_space<vmem>>, vector<8x1xf32>
    %113 = vector.broadcast %112 : vector<8x1xf32> to vector<8x256xf32>
    %114 = arith.addf %111, %113 : vector<8x256xf32>
    %c0_32 = arith.constant 0 : index
    %c0_33 = arith.constant 0 : index
    %c0_34 = arith.constant 0 : index
    %115 = vector.load %arg7[%c0_32, %c0_33, %c0_34] : memref<1x8x256xf32, #tpu.memory_space<vmem>>, vector<1x8x256xf32>
    %116 = vector.shape_cast %115 : vector<1x8x256xf32> to vector<8x256xf32>
    %117 = vector.shape_cast %114 : vector<8x256xf32> to vector<1x8x256xf32>
    tpu.vector_store %arg7[%c0_32, %c0_33, %c0_34], %117 {strides = array<i32>} : memref<1x8x256xf32, #tpu.memory_space<vmem>>, vector<1x8x256xf32>,
    return
  }
  func.func @transform_0(%arg0: i32, %arg1: i32) -> (i32, i32, i32) {
    %c0_i32 = arith.constant 0 : i32
    %c0_i32_0 = arith.constant 0 : i32
    return %arg0, %c0_i32, %arg1 : i32, i32, i32
  }
  func.func @transform_1(%arg0: i32, %arg1: i32) -> (i32, i32) {
    %c0_i32 = arith.constant 0 : i32
    %c0_i32_0 = arith.constant 0 : i32
    %c0_i32_1 = arith.constant 0 : i32
    return %c0_i32, %c0_i32_0 : i32, i32
  }
  func.func @transform_2(%arg0: i32, %arg1: i32) -> (i32, i32) {
    %c0_i32 = arith.constant 0 : i32
    %c0_i32_0 = arith.constant 0 : i32
    %c0_i32_1 = arith.constant 0 : i32
    return %c0_i32, %c0_i32_0 : i32, i32
  }
  func.func @transform_3(%arg0: i32, %arg1: i32) -> (i32, i32) {
    %c0_i32 = arith.constant 0 : i32
    %c0_i32_0 = arith.constant 0 : i32
    %c0_i32_1 = arith.constant 0 : i32
    return %c0_i32, %c0_i32_0 : i32, i32
  }
  func.func @transform_4(%arg0: i32, %arg1: i32) -> (i32, i32) {
    %c0_i32 = arith.constant 0 : i32
    %c0_i32_0 = arith.constant 0 : i32
    %c0_i32_1 = arith.constant 0 : i32
    return %c0_i32, %c0_i32_0 : i32, i32
  }
  func.func @transform_5(%arg0: i32, %arg1: i32) -> (i32, i32, i32) {
    %c0_i32 = arith.constant 0 : i32
    %c0_i32_0 = arith.constant 0 : i32
    return %arg0, %c0_i32, %arg1 : i32, i32, i32
  }
}

</mosaic_0001>

<llo_original>
// kernel: tpu_custom_call.1
$region0: #{tpu_custom_call.1}
  #allocation0 [shape = 'u32[]', space=smem, size = 0x4, offset = 0x4, fixed_abs, tag = 'smem constant byte address 0x4 - core index']
  #allocation1 [shape = 'u32[72,128]{1,0:T(1,128)}', space=vmem, size = 0x9000, scoped, tag = 'internal scratch']
  #allocation2 [shape = 'f32[8,290]{1,0:T(8,128)}', space=vmem, size = 0x3000, scoped, tag = 'scratch operand']
  %s0 = inlined_call_operand.vmem [shape: f32[2,4,256], index: 0, kind: input, shape index: {}]
  %s1 = inlined_call_operand.vmem [shape: f32[8,4], index: 1, kind: input, shape index: {}]
  %s2 = inlined_call_operand.hbm [shape: f32[8,9], index: 2, kind: input, shape index: {}]
  %s3 = inlined_call_operand.vmem [shape: f32[8,1], index: 3, kind: input, shape index: {}]
  %s4 = inlined_call_operand.vmem [shape: f32[2,256], index: 4, kind: input, shape index: {}]
  %s5 = inlined_call_operand.hbm [shape: f32[2,8,256], index: 5, kind: output, shape index: {}]
  %s6 = sld [smem:[#allocation0]]
  $region57: #{tpu_custom_call.1} parent=0
    _
  %s8 = ssub.s32 1, %s6
  %s9 = scalar_select 0, %s8, %s6
  $region1: #{tpu_custom_call.1} parent=0
    #allocation3 [shape = 'u8[4096]{0}', space=vmem, size = 0x1000, scoped, tag = 'input window, operand 2, single buffered']
    #allocation4 [shape = 's32[2]{0}', space=sflag, size = 0x8, scoped, tag = 'scoped memory for tpu_custom_call.1']
    #allocation5 [shape = 's32[2]{0}', space=sflag, size = 0x8, scoped, tag = 'scoped memory for tpu_custom_call.1']
    #allocation6 [shape = 'u8[16384]{0}', space=vmem, size = 0x4000, scoped, tag = 'output window, operand 0']
    %10 = vsyncpa [#allocation4], 0
    %11 = vsyncpa [#allocation5], 0
    %s12 = scalar_lea.sflag [#allocation5], 1
    %13 = vsyncpa %s12, 0
    loop: start=0, step=1, limit=4
    $region2: #{tpu_custom_call.1} parent=1 // loop_pre_header
      _
    $region3: #{tpu_custom_call.1} parent=1 // loop_header
      %s15 = sphi 0, %s19
      %p16 = scmp.ge.s32.totalorder %s15, 4
      %s22 = sphi 0, %s34
      %s23 = sphi 0, %s30
      %s24 = sphi 0, %s22
      %s25 = sphi 0, %s23
      %s26 = sphi 0, %s24
      %s27 = sphi 0, %s25
      %s39 = sphi 0, %s41
      %s42 = sphi 0, %s39
      %s43 = sphi 0, %s42
      %s59 = sphi 0, %s43
      %s63 = sphi 0, %s63
      %s65 = sphi 0, %s63
      %s66 = sphi 0, %s65
      %s80 = sphi 0, %s66
      %s84 = sphi 0, %s84
      %s86 = sphi 0, %s84
      %s87 = sphi 0, %s86
      %s101 = sphi 0, %s87
      %s105 = sphi 0, %s105
      %s107 = sphi 0, %s105
      %s108 = sphi 0, %s107
      %s122 = sphi 0, %s108
      %s126 = sphi 0, %s126
      %s128 = sphi 0, %s126
      %s129 = sphi 0, %s128
      %s143 = sphi 0, %s129
      %s151 = sphi 0, %s153
      %s154 = sphi 0, %s151
      %s155 = sphi 0, %s154
      %s171 = sphi 0, %s155
    $region4: #{tpu_custom_call.1} parent=1 // loop_header_branch
      %18 = sbr.rel (%p16) target = $region8
    $region5: #{tpu_custom_call.1} parent=1 // loop_body
      %s20 = ssub.s32 %s15, 1
      %s21 = ssub.s32 %s15, 2
      %s28 = sadd.s32 1, %s23
      %p29 = scmp.ge.s32.totalorder %s28, 1
      %s30 = scalar_select %p29, 0, %s28
      %s31 = sadd.s32 1, %s22
      %s32 = scalar_select %p29, %s31, %s22
      %p33 = scmp.ge.s32.totalorder %s32, 2
      %s34 = scalar_select %p33, 0, %s32
      %s35 = ssub.s32 %s22, %s34
      %s36 = ssub.s32 %s23, %s30
      %s37 = sor.u32 %s35, %s36
      %p38 = scmp.eq.s32.totalorder %s37, 0
      %s40 = sadd.s32 %s39, 1
      %s41 = scalar_select %p38, %s39, %s40
      %p44 = pneg %p38
      %p45 = scmp.eq.s32.totalorder %s15, 1
      %p46 = por %p44, %p45
      %p47 = scmp.ne.s32.totalorder %s39, %s42
      %p48 = scmp.eq.s32.totalorder %s15, 0
      %p49 = por %p47, %p48
      %p50 = scmp.ne.s32.totalorder %s39, %s42
      %p51 = scmp.eq.s32.totalorder %s20, 1
      %p52 = por %p50, %p51
      %p53 = scmp.ne.s32.totalorder %s42, %s43
      %p54 = scmp.eq.s32.totalorder %s20, 0
      %p55 = por %p53, %p54
      %p56 = scmp.ne.s32.totalorder %s42, %s43
      %p57 = scmp.eq.s32.totalorder %s21, 1
      %p58 = por %p56, %p57
      %p60 = scmp.ne.s32.totalorder %s43, %s59
      %p61 = scmp.eq.s32.totalorder %s21, 0
      %p62 = por %p60, %p61
      %s64 = sadd.s32 %s63, 1
      %p67 = scmp.eq.s32.totalorder %s15, 1
      %p68 = scmp.ne.s32.totalorder %s63, %s65
      %p69 = scmp.eq.s32.totalorder %s15, 0
      %p70 = por %p68, %p69
      %p71 = scmp.ne.s32.totalorder %s63, %s65
      %p72 = scmp.eq.s32.totalorder %s20, 1
      %p73 = por %p71, %p72
      %p74 = scmp.ne.s32.totalorder %s65, %s66
      %p75 = scmp.eq.s32.totalorder %s20, 0
      %p76 = por %p74, %p75
      %p77 = scmp.ne.s32.totalorder %s65, %s66
      %p78 = scmp.eq.s32.totalorder %s21, 1
      %p79 = por %p77, %p78
      %p81 = scmp.ne.s32.totalorder %s66, %s80
      %p82 = scmp.eq.s32.totalorder %s21, 0
      %p83 = por %p81, %p82
      %s85 = sadd.s32 %s84, 1
      %p88 = scmp.eq.s32.totalorder %s15, 1
      %p89 = scmp.ne.s32.totalorder %s84, %s86
      %p90 = scmp.eq.s32.totalorder %s15, 0
      %p91 = por %p89, %p90
      %p92 = scmp.ne.s32.totalorder %s84, %s86
      %p93 = scmp.eq.s32.totalorder %s20, 1
      %p94 = por %p92, %p93
      %p95 = scmp.ne.s32.totalorder %s86, %s87
      %p96 = scmp.eq.s32.totalorder %s20, 0
      %p97 = por %p95, %p96
      %p98 = scmp.ne.s32.totalorder %s86, %s87
      %p99 = scmp.eq.s32.totalorder %s21, 1
      %p100 = por %p98, %p99
      %p102 = scmp.ne.s32.totalorder %s87, %s101
      %p103 = scmp.eq.s32.totalorder %s21, 0
      %p104 = por %p102, %p103
      %s106 = sadd.s32 %s105, 1
      %p109 = scmp.eq.s32.totalorder %s15, 1
      %p110 = scmp.ne.s32.totalorder %s105, %s107
      %p111 = scmp.eq.s32.totalorder %s15, 0
      %p112 = por %p110, %p111
      %p113 = scmp.ne.s32.totalorder %s105, %s107
      %p114 = scmp.eq.s32.totalorder %s20, 1
      %p115 = por %p113, %p114
      %p116 = scmp.ne.s32.totalorder %s107, %s108
      %p117 = scmp.eq.s32.totalorder %s20, 0
      %p118 = por %p116, %p117
      %p119 = scmp.ne.s32.totalorder %s107, %s108
      %p120 = scmp.eq.s32.totalorder %s21, 1
      %p121 = por %p119, %p120
      %p123 = scmp.ne.s32.totalorder %s108, %s122
      %p124 = scmp.eq.s32.totalorder %s21, 0
      %p125 = por %p123, %p124
      %s127 = sadd.s32 %s126, 1
      %p130 = scmp.eq.s32.totalorder %s15, 1
      %p131 = scmp.ne.s32.totalorder %s126, %s128
      %p132 = scmp.eq.s32.totalorder %s15, 0
      %p133 = por %p131, %p132
      %p134 = scmp.ne.s32.totalorder %s126, %s128
      %p135 = scmp.eq.s32.totalorder %s20, 1
      %p136 = por %p134, %p135
      %p137 = scmp.ne.s32.totalorder %s128, %s129
      %p138 = scmp.eq.s32.totalorder %s20, 0
      %p139 = por %p137, %p138
      %p140 = scmp.ne.s32.totalorder %s128, %s129
      %p141 = scmp.eq.s32.totalorder %s21, 1
      %p142 = por %p140, %p141
      %p144 = scmp.ne.s32.totalorder %s129, %s143
      %p145 = scmp.eq.s32.totalorder %s21, 0
      %p146 = por %p144, %p145
      %s147 = ssub.s32 %s22, %s34
      %s148 = ssub.s32 %s23, %s30
      %s149 = sor.u32 %s147, %s148
      %p150 = scmp.eq.s32.totalorder %s149, 0
      %s152 = sadd.s32 %s151, 1
      %s153 = scalar_select %p150, %s151, %s152
      %p156 = pneg %p150
      %p157 = scmp.eq.s32.totalorder %s15, 1
      %p158 = por %p156, %p157
      %p159 = scmp.ne.s32.totalorder %s151, %s154
      %p160 = scmp.eq.s32.totalorder %s15, 0
      %p161 = por %p159, %p160
      %p162 = scmp.ne.s32.totalorder %s151, %s154
      %p163 = scmp.eq.s32.totalorder %s20, 1
      %p164 = por %p162, %p163
      %p165 = scmp.ne.s32.totalorder %s154, %s155
      %p166 = scmp.eq.s32.totalorder %s20, 0
      %p167 = por %p165, %p166
      %p168 = scmp.ne.s32.totalorder %s154, %s155
      %p169 = scmp.eq.s32.totalorder %s21, 1
      %p170 = por %p168, %p169
      %p172 = scmp.ne.s32.totalorder %s155, %s171
      %p173 = scmp.eq.s32.totalorder %s21, 0
      %p174 = por %p172, %p173
      %p175 = scmp.le.s32.totalorder 1, %s15
      %p176 = scmp.lt.s32.totalorder %s15, 3
      %p177 = pnand %p175, %p176
      %p178 = pneg %p177
      // Predicated region
      $region9: #{tpu_custom_call.1} parent=5 // pred_check
        _
      $region10: #{tpu_custom_call.1} parent=5 // pred_check_branch
        %180 = sbr.rel (%p177) target = $region12
      $region11: #{tpu_custom_call.1} parent=5 // pred_region
        %s181 = ssub.s32 %s15, 1
        // Predicated region
        $region13: #{tpu_custom_call.1} parent=11 // pred_check
          %p182 = pneg %p76
        $region14: #{tpu_custom_call.1} parent=11 // pred_check_branch
          %184 = sbr.rel (%p182) target = $region16
        $region15: #{tpu_custom_call.1} parent=11 // pred_region
          _
        $region16: #{tpu_custom_call.1} parent=11 // pred_fallthru
          _
        // Predicated region
        $region17: #{tpu_custom_call.1} parent=11 // pred_check
          %p185 = pneg %p97
        $region18: #{tpu_custom_call.1} parent=11 // pred_check_branch
          %187 = sbr.rel (%p185) target = $region20
        $region19: #{tpu_custom_call.1} parent=11 // pred_region
          %189 = vsyncadd [#allocation4], 0
          %s191 = sshll.u32 %s2, 4
          %s192 = int_to_ptr.hbm [resolvable:$true] %s191
          %s193 = sshll.u32 [#allocation3], 4
          %s194 = int_to_ptr.vmem [resolvable:$true] %s193
          %196 = dma.hbm_to_vmem [thread:$0]  %s192, 128, %s194, [#allocation4]
        $region20: #{tpu_custom_call.1} parent=11 // pred_fallthru
          _
        // Predicated region
        $region21: #{tpu_custom_call.1} parent=11 // pred_check
          %p197 = pneg %p118
        $region22: #{tpu_custom_call.1} parent=11 // pred_check_branch
          %199 = sbr.rel (%p197) target = $region24
        $region23: #{tpu_custom_call.1} parent=11 // pred_region
          _
        $region24: #{tpu_custom_call.1} parent=11 // pred_fallthru
          _
        // Predicated region
        $region25: #{tpu_custom_call.1} parent=11 // pred_check
          %p200 = pneg %p139
        $region26: #{tpu_custom_call.1} parent=11 // pred_check_branch
          %202 = sbr.rel (%p200) target = $region28
        $region27: #{tpu_custom_call.1} parent=11 // pred_region
          _
        $region28: #{tpu_custom_call.1} parent=11 // pred_fallthru
          _
      $region12: #{tpu_custom_call.1} parent=5 // pred_fallthru
        _
      %p203 = scmp.lt.s32.totalorder %s15, 2
      // Predicated region
      $region29: #{tpu_custom_call.1} parent=5 // pred_check
        %p204 = pneg %p203
      $region30: #{tpu_custom_call.1} parent=5 // pred_check_branch
        %206 = sbr.rel (%p204) target = $region32
      $region31: #{tpu_custom_call.1} parent=5 // pred_region
        // Predicated region
        $region33: #{tpu_custom_call.1} parent=31 // pred_check
          %p207 = pneg %p49
        $region34: #{tpu_custom_call.1} parent=31 // pred_check_branch
          %209 = sbr.rel (%p207) target = $region36
        $region35: #{tpu_custom_call.1} parent=31 // pred_region
          %s210 = smul.u32 2, %s23
          %p211 = scmp.lt.s32.totalorder %s22, 1
          %s212 = scalar_select %p211, %s22, 1
          %p213 = scmp.lt.s32.totalorder %s210, 1
          %s214 = scalar_select %p213, %s210, 1
          %s215 = smul.addr %s212, 2
          %s216 = sadd.s32 %s214, %s215
          %s217 = smul.addr %s216, 4
          %s218 = scalar_lea.vmem %s0, %s217
          %s219 = smul.u32 2, %s23
        $region36: #{tpu_custom_call.1} parent=31 // pred_fallthru
          _
      $region32: #{tpu_custom_call.1} parent=5 // pred_fallthru
        _
      %p220 = scmp.le.s32.totalorder 1, %s15
      %p221 = scmp.lt.s32.totalorder %s15, 3
      %p222 = pnand %p220, %p221
      %p223 = pneg %p222
      // Predicated region
      $region37: #{tpu_custom_call.1} parent=5 // pred_check
        _
      $region38: #{tpu_custom_call.1} parent=5 // pred_check_branch
        %225 = sbr.rel (%p222) target = $region40
      $region39: #{tpu_custom_call.1} parent=5 // pred_region
        %s226 = ssub.s32 %s15, 1
        // Predicated region
        $region41: #{tpu_custom_call.1} parent=39 // pred_check
          %p227 = pneg %p97
        $region42: #{tpu_custom_call.1} parent=39 // pred_check_branch
          %229 = sbr.rel (%p227) target = $region44
        $region43: #{tpu_custom_call.1} parent=39 // pred_region
          %231 = dma.done [#allocation4], 128
        $region44: #{tpu_custom_call.1} parent=39 // pred_fallthru
          _
        %s232 = smul.u32 2, %s25
        %p233 = scmp.lt.s32.totalorder %s24, 1
        %s234 = scalar_select %p233, %s24, 1
        %p235 = scmp.lt.s32.totalorder %s232, 1
        %s236 = scalar_select %p235, %s232, 1
        %s237 = smul.addr %s234, 2
        %s238 = sadd.s32 %s236, %s237
        %s239 = smul.addr %s238, 4
        %s240 = scalar_lea.vmem %s0, %s239
        %p241 = pneg %p55
        %p242 = pneg %p52
        %p243 = pneg %p76
        %p244 = pneg %p73
        %p245 = pneg %p97
        %p246 = pneg %p94
        %p247 = pneg %p118
        %p248 = pneg %p115
        %p249 = pneg %p139
        %p250 = pneg %p136
        %p251 = pneg %p167
        %p252 = pneg %p164
        %s253 = sand.u32 %s154, 1
        %s254 = scalar_lea.sflag [#allocation5], %s253
        %s255 = sand.u32 %s154, 1
        %s256 = smul.addr %s255, 16
        %s257 = scalar_lea.vmem [#allocation6], %s256
        %s258 = smul.u32 2, %s25
        %p259 = scmp.lt.s32.totalorder %s24, 1
        %s260 = scalar_select %p259, %s24, 1
        %p261 = scmp.lt.s32.totalorder %s258, 1
        %s262 = scalar_select %p261, %s258, 1
        %s263 = smul.addr %s260, 2
        %s264 = sadd.s32 %s262, %s263
        %s265 = smul.addr %s264, 4
        %s266 = scalar_lea.vmem %s0, %s265
        %s267 = smul.u32 2, %s25
        %s268 = smul.u32 2, %s25
        %v269 = vld [vmem:[%s266] sm:$0xff]
        %271 = vst [vmem:[#allocation1] ss:$2 sm:$0xff] %v269
        %v272 = vld.sshfl [vmem:[#allocation1] sm:$0xff pattern:$0x75316420]
        %v273 = vld.sshfl [vmem:[#allocation1 + $0x8] sm:$0xff pattern:$0x75316420]
        %274 = vrot.lane.b32.xlu0 %v272, 16
        %v275 = vpop.permute.xlu0 %274
        %276 = vrot.lane.b32.xlu0 %v273, 16
        %v277 = vpop.permute.xlu0 %276
        %vm278 = vcmask 130048
        %v279 = vsel %vm278, %v275, %v277
        %v283 = vsel %vm278, 0.0, %v275
        %v284 = vsel %vm278, %v277, 0.0
        %v285 = vld [vmem:[%s1] sm:$0xff]
        %287 = vset.pattern.permute.xlu0 0
        %288 = vperm.xlu0 %287, %v285
        %v289 = vpop.permute.xlu0 %288
        %v291 = vperm.slane %v283, 0
        %v292 = vperm.slane %v279, 0
        %v293 = vperm.slane %v284, 0
        %v294 = vmul.f32 %v289, %v291
        %v295 = vmul.f32 %v289, %v292
        %v296 = vmul.f32 %v289, %v293
        %v297 = vadd.f32 %v294, 0.0
        %v298 = vadd.f32 %v295, 0.0
        %v299 = vadd.f32 %v296, 0.0
        %300 = vset.pattern.permute.xlu0 1
        %301 = vperm.xlu0 %300, %v285
        %v302 = vpop.permute.xlu0 %301
        %v304 = vperm.slane %v283, 1
        %v305 = vperm.slane %v279, 1
        %v306 = vperm.slane %v284, 1
        %v307 = vmul.f32 %v302, %v304
        %v308 = vmul.f32 %v302, %v305
        %v309 = vmul.f32 %v302, %v306
        %v310 = vadd.f32 %v297, %v307
        %v311 = vadd.f32 %v298, %v308
        %v312 = vadd.f32 %v299, %v309
        %313 = vset.pattern.permute.xlu0 2
        %314 = vperm.xlu0 %313, %v285
        %v315 = vpop.permute.xlu0 %314
        %v317 = vperm.slane %v283, 2
        %v318 = vperm.slane %v279, 2
        %v319 = vperm.slane %v284, 2
        %v320 = vmul.f32 %v315, %v317
        %v321 = vmul.f32 %v315, %v318
        %v322 = vmul.f32 %v315, %v319
        %v323 = vadd.f32 %v310, %v320
        %v324 = vadd.f32 %v311, %v321
        %v325 = vadd.f32 %v312, %v322
        %326 = vset.pattern.permute.xlu0 3
        %327 = vperm.xlu0 %326, %v285
        %v328 = vpop.permute.xlu0 %327
        %v330 = vperm.slane %v283, 3
        %v331 = vperm.slane %v279, 3
        %v332 = vperm.slane %v284, 3
        %v333 = vmul.f32 %v328, %v330
        %v334 = vmul.f32 %v328, %v331
        %v335 = vmul.f32 %v328, %v332
        %v336 = vadd.f32 %v323, %v333
        %v337 = vadd.f32 %v324, %v334
        %v338 = vadd.f32 %v325, %v335
        %342 = vrot.lane.b32.xlu0 %v336, 1
        %v343 = vpop.permute.xlu0 %342
        %344 = vrot.lane.b32.xlu0 %v337, 1
        %v345 = vpop.permute.xlu0 %344
        %346 = vrot.lane.b32.xlu0 %v338, 1
        %v347 = vpop.permute.xlu0 %346
        %vm348 = vcmask 7168
        %v349 = vsel %vm348, %v343, %v345
        %v350 = vsel %vm348, %v345, %v347
        %vm354 = vcmask 1047560
        %355 = vst.msk [vmem:[#allocation2] sm:$0xff] %vm354, %v343
        %356 = vst [vmem:[#allocation2 + $0x8] sm:$0xff] %v349
        %vm357 = vcmask 269312
        %358 = vst.msk [vmem:[#allocation2 + $0x10] sm:$0xff] %vm357, %v350
        %v359 = vld [vmem:[#allocation3] sm:$0xff]
        %v360 = vld [vmem:[%s4] sm:$0xf]
        %vm361 = vcmp.gt.f32.partialorder %v360, 0.5
        %v362 = vld [vmem:[#allocation2] sm:$0xff]
        %v363 = vld [vmem:[#allocation2 + $0x8] sm:$0xff]
        %v364 = vsel %vm361, 1, 0
        %vm365 = vcmp.eq.s32.totalorder %v364, 1
        %v368 = vrot.slane %v363, 6
        %vm369 = vcmask 1041408
        %v370 = vsel %vm369, %v362, %v368
        %vm371 = vcmask 1043458
        %v372 = vsel %vm371, %v362, %v368
        %v373 = vrot.slane %v372, 2
        %vm374 = vcmask 1045508
        %v375 = vsel %vm374, %v362, %v368
        %v376 = vrot.slane %v375, 4
        %vm377 = vcmask 1045504
        %v378 = vsel %vm377, %v368, %v362
        %v379 = vrot.slane %v378, 6
        %v380 = vrot.slane %v370, 1
        %v381 = vrot.slane %v373, 1
        %v382 = vrot.slane %v376, 1
        %v383 = vrot.slane %v379, 1
        %v392 = vsel %vm365, %v370, 0.0
        %v393 = vsel %vm365, %v380, 0.0
        %v394 = vsel %vm365, %v373, 0.0
        %v395 = vsel %vm365, %v381, 0.0
        %v396 = vsel %vm365, %v376, 0.0
        %v397 = vsel %vm365, %v382, 0.0
        %v398 = vsel %vm365, %v379, 0.0
        %v399 = vsel %vm365, %v383, 0.0
        %401 = vset.pattern.permute.xlu0 0
        %402 = vperm.xlu0 %401, %v359
        %v403 = vpop.permute.xlu0 %402
        %v405 = vunpack.c.l.s4 269488144
        %v406 = vunpack.c.0.s8 %v405
        %v407 = vperm.slane %v403, %v406
        %v409 = vunpack.c.l.s4 842150450
        %v410 = vunpack.c.0.s8 %v409
        %v411 = vperm.slane %v403, %v410
        %v413 = vunpack.c.l.s4 1414812756
        %v414 = vunpack.c.0.s8 %v413
        %v415 = vperm.slane %v403, %v414
        %v417 = vunpack.c.l.s4 1987475062
        %v418 = vunpack.c.0.s8 %v417
        %v419 = vperm.slane %v403, %v418
        %v420 = vrot.slane %v407, 1
        %v421 = vrot.slane %v411, 1
        %v422 = vrot.slane %v415, 1
        %v423 = vrot.slane %v419, 1
        %v432 = vmul.f32 %v392, %v407
        %v433 = vmul.f32 %v393, %v420
        %v434 = vmul.f32 %v394, %v411
        %v435 = vmul.f32 %v395, %v421
        %v436 = vmul.f32 %v396, %v415
        %v437 = vmul.f32 %v397, %v422
        %v438 = vmul.f32 %v398, %v419
        %v439 = vmul.f32 %v399, %v423
        %v440 = vadd.f32 %v432, 0.0
        %v441 = vadd.f32 %v433, 0.0
        %v442 = vadd.f32 %v434, 0.0
        %v443 = vadd.f32 %v435, 0.0
        %v444 = vadd.f32 %v436, 0.0
        %v445 = vadd.f32 %v437, 0.0
        %v446 = vadd.f32 %v438, 0.0
        %v447 = vadd.f32 %v439, 0.0
        %v448 = vld [vmem:[#allocation2] sm:$0xff]
        %v449 = vld [vmem:[#allocation2 + $0x8] sm:$0xff]
        %v450 = vld [vmem:[#allocation2 + $0x10] sm:$0xff]
        %451 = vset.pattern.permute.xlu0 1
        %452 = vperm.xlu0 %451, %v359
        %v453 = vpop.permute.xlu0 %452
        %v455 = vmul.f32 %v448, %v453
        %v456 = vmul.f32 %v449, %v453
        %v457 = vmul.f32 %v450, %v453
        %v461 = vrot.slane %v456, 6
        %v462 = vrot.slane %v457, 4
        %v463 = vsel %vm369, %v455, %v461
        %vm464 = vcmask 1043456
        %v465 = vsel %vm464, %v463, %v462
        %v466 = vsel %vm371, %v455, %v461
        %vm467 = vcmask 1045506
        %v468 = vsel %vm467, %v466, %v462
        %v469 = vrot.slane %v468, 2
        %v470 = vsel %vm374, %v455, %v461
        %v471 = vsel %vm464, %v462, %v470
        %v472 = vrot.slane %v471, 4
        %v473 = vsel %vm377, %v461, %v455
        %v474 = vsel %vm467, %v462, %v473
        %v475 = vrot.slane %v474, 6
        %v476 = vrot.slane %v465, 1
        %v477 = vrot.slane %v469, 1
        %v478 = vrot.slane %v472, 1
        %v479 = vrot.slane %v475, 1
        %480 = vrot.lane.b32.xlu0 %v465, 127
        %v481 = vpop.permute.xlu0 %480
        %482 = vrot.lane.b32.xlu0 %v476, 127
        %v483 = vpop.permute.xlu0 %482
        %484 = vrot.lane.b32.xlu0 %v469, 127
        %v485 = vpop.permute.xlu0 %484
        %486 = vrot.lane.b32.xlu0 %v477, 127
        %v487 = vpop.permute.xlu0 %486
        %488 = vrot.lane.b32.xlu0 %v472, 127
        %v489 = vpop.permute.xlu0 %488
        %490 = vrot.lane.b32.xlu0 %v478, 127
        %v491 = vpop.permute.xlu0 %490
        %492 = vrot.lane.b32.xlu0 %v475, 127
        %v493 = vpop.permute.xlu0 %492
        %494 = vrot.lane.b32.xlu0 %v479, 127
        %v495 = vpop.permute.xlu0 %494
        %v496 = vrot.slane %v481, 2
        %v497 = vrot.slane %v483, 2
        %v498 = vrot.slane %v485, 2
        %v499 = vrot.slane %v487, 2
        %v500 = vrot.slane %v489, 2
        %v501 = vrot.slane %v491, 2
        %v502 = vrot.slane %v493, 2
        %v503 = vrot.slane %v495, 2
        %vm504 = vcmask 1039360
        %v505 = vsel %vm504, %v481, %v496
        %v506 = vsel %vm504, %v483, %v497
        %v507 = vsel %vm504, %v485, %v498
        %v508 = vsel %vm504, %v487, %v499
        %v509 = vsel %vm504, %v489, %v500
        %v510 = vsel %vm504, %v491, %v501
        %v511 = vsel %vm504, %v493, %v502
        %v512 = vsel %vm504, %v495, %v503
        %v521 = vadd.f32 %v440, %v505
        %v522 = vadd.f32 %v441, %v506
        %v523 = vadd.f32 %v442, %v507
        %v524 = vadd.f32 %v443, %v508
        %v525 = vadd.f32 %v444, %v509
        %v526 = vadd.f32 %v445, %v510
        %v527 = vadd.f32 %v446, %v511
        %v528 = vadd.f32 %v447, %v512
        %v532 = vrot.slane %v449, 6
        %v533 = vrot.slane %v450, 4
        %v534 = vsel %vm369, %v448, %v532
        %v535 = vsel %vm464, %v534, %v533
        %v536 = vsel %vm371, %v448, %v532
        %v537 = vsel %vm467, %v536, %v533
        %v538 = vrot.slane %v537, 2
        %v539 = vsel %vm374, %v448, %v532
        %v540 = vsel %vm464, %v533, %v539
        %v541 = vrot.slane %v540, 4
        %v542 = vsel %vm377, %v532, %v448
        %v543 = vsel %vm467, %v533, %v542
        %v544 = vrot.slane %v543, 6
        %v545 = vrot.slane %v535, 7
        %v546 = vrot.slane %v538, 7
        %v547 = vrot.slane %v541, 7
        %v548 = vrot.slane %v544, 7
        %549 = vrot.lane.b32.xlu0 %v545, 126
        %v550 = vpop.permute.xlu0 %549
        %551 = vrot.lane.b32.xlu0 %v535, 126
        %v552 = vpop.permute.xlu0 %551
        %553 = vrot.lane.b32.xlu0 %v546, 126
        %v554 = vpop.permute.xlu0 %553
        %555 = vrot.lane.b32.xlu0 %v538, 126
        %v556 = vpop.permute.xlu0 %555
        %557 = vrot.lane.b32.xlu0 %v547, 126
        %v558 = vpop.permute.xlu0 %557
        %559 = vrot.lane.b32.xlu0 %v541, 126
        %v560 = vpop.permute.xlu0 %559
        %561 = vrot.lane.b32.xlu0 %v548, 126
        %v562 = vpop.permute.xlu0 %561
        %563 = vrot.lane.b32.xlu0 %v544, 126
        %v564 = vpop.permute.xlu0 %563
        %v565 = vrot.slane %v550, 2
        %v566 = vrot.slane %v552, 2
        %v567 = vrot.slane %v554, 2
        %v568 = vrot.slane %v556, 2
        %v569 = vrot.slane %v558, 2
        %v570 = vrot.slane %v560, 2
        %v571 = vrot.slane %v562, 2
        %v572 = vrot.slane %v564, 2
        %vm573 = vcmask 1031168
        %v574 = vsel %vm573, %v550, %v565
        %v575 = vsel %vm573, %v552, %v566
        %v576 = vsel %vm573, %v554, %v567
        %v577 = vsel %vm573, %v556, %v568
        %v578 = vsel %vm573, %v558, %v569
        %v579 = vsel %vm573, %v560, %v570
        %v580 = vsel %vm573, %v562, %v571
        %v581 = vsel %vm573, %v564, %v572
        %v590 = vsel %vm365, %v574, 0.0
        %v591 = vsel %vm365, %v575, 0.0
        %v592 = vsel %vm365, %v576, 0.0
        %v593 = vsel %vm365, %v577, 0.0
        %v594 = vsel %vm365, %v578, 0.0
        %v595 = vsel %vm365, %v579, 0.0
        %v596 = vsel %vm365, %v580, 0.0
        %v597 = vsel %vm365, %v581, 0.0
        %598 = vset.pattern.permute.xlu0 2
        %599 = vperm.xlu0 %598, %v359
        %v600 = vpop.permute.xlu0 %599
        %v602 = vunpack.c.l.s4 269488144
        %v603 = vunpack.c.0.s8 %v602
        %v604 = vperm.slane %v600, %v603
        %v606 = vunpack.c.l.s4 842150450
        %v607 = vunpack.c.0.s8 %v606
        %v608 = vperm.slane %v600, %v607
        %v610 = vunpack.c.l.s4 1414812756
        %v611 = vunpack.c.0.s8 %v610
        %v612 = vperm.slane %v600, %v611
        %v614 = vunpack.c.l.s4 1987475062
        %v615 = vunpack.c.0.s8 %v614
        %v616 = vperm.slane %v600, %v615
        %v617 = vrot.slane %v604, 7
        %v618 = vrot.slane %v608, 7
        %v619 = vrot.slane %v612, 7
        %v620 = vrot.slane %v616, 7
        %v629 = vmul.f32 %v590, %v617
        %v630 = vmul.f32 %v591, %v604
        %v631 = vmul.f32 %v592, %v618
        %v632 = vmul.f32 %v593, %v608
        %v633 = vmul.f32 %v594, %v619
        %v634 = vmul.f32 %v595, %v612
        %v635 = vmul.f32 %v596, %v620
        %v636 = vmul.f32 %v597, %v616
        %v645 = vrot.slane %v629, 7
        %v646 = vrot.slane %v645, 2
        %v647 = vrot.slane %v630, 7
        %v648 = vrot.slane %v647, 2
        %v649 = vrot.slane %v631, 7
        %v650 = vrot.slane %v649, 2
        %v651 = vrot.slane %v632, 7
        %v652 = vrot.slane %v651, 2
        %v653 = vrot.slane %v633, 7
        %v654 = vrot.slane %v653, 2
        %v655 = vrot.slane %v634, 7
        %v656 = vrot.slane %v655, 2
        %v657 = vrot.slane %v635, 7
        %v658 = vrot.slane %v657, 2
        %v659 = vrot.slane %v636, 7
        %v660 = vrot.slane %v659, 2
        %v669 = vadd.f32 %v521, %v646
        %v670 = vadd.f32 %v522, %v648
        %v671 = vadd.f32 %v523, %v650
        %v672 = vadd.f32 %v524, %v652
        %v673 = vadd.f32 %v525, %v654
        %v674 = vadd.f32 %v526, %v656
        %v675 = vadd.f32 %v527, %v658
        %v676 = vadd.f32 %v528, %v660
        %v677 = vrot.slane %v535, 1
        %v678 = vrot.slane %v538, 1
        %v679 = vrot.slane %v541, 1
        %v680 = vrot.slane %v544, 1
        %681 = vrot.lane.b32.xlu0 %v535, 112
        %v682 = vpop.permute.xlu0 %681
        %683 = vrot.lane.b32.xlu0 %v677, 112
        %v684 = vpop.permute.xlu0 %683
        %685 = vrot.lane.b32.xlu0 %v538, 112
        %v686 = vpop.permute.xlu0 %685
        %687 = vrot.lane.b32.xlu0 %v678, 112
        %v688 = vpop.permute.xlu0 %687
        %689 = vrot.lane.b32.xlu0 %v541, 112
        %v690 = vpop.permute.xlu0 %689
        %691 = vrot.lane.b32.xlu0 %v679, 112
        %v692 = vpop.permute.xlu0 %691
        %693 = vrot.lane.b32.xlu0 %v544, 112
        %v694 = vpop.permute.xlu0 %693
        %695 = vrot.lane.b32.xlu0 %v680, 112
        %v696 = vpop.permute.xlu0 %695
        %v697 = vrot.slane %v682, 2
        %v698 = vrot.slane %v684, 2
        %v699 = vrot.slane %v686, 2
        %v700 = vrot.slane %v688, 2
        %v701 = vrot.slane %v690, 2
        %v702 = vrot.slane %v692, 2
        %v703 = vrot.slane %v694, 2
        %v704 = vrot.slane %v696, 2
        %vm705 = vcmask 916480
        %v706 = vsel %vm705, %v682, %v697
        %v707 = vsel %vm705, %v684, %v698
        %v708 = vsel %vm705, %v686, %v699
        %v709 = vsel %vm705, %v688, %v700
        %v710 = vsel %vm705, %v690, %v701
        %v711 = vsel %vm705, %v692, %v702
        %v712 = vsel %vm705, %v694, %v703
        %v713 = vsel %vm705, %v696, %v704
        %v722 = vsel %vm365, %v706, 0.0
        %v723 = vsel %vm365, %v707, 0.0
        %v724 = vsel %vm365, %v708, 0.0
        %v725 = vsel %vm365, %v709, 0.0
        %v726 = vsel %vm365, %v710, 0.0
        %v727 = vsel %vm365, %v711, 0.0
        %v728 = vsel %vm365, %v712, 0.0
        %v729 = vsel %vm365, %v713, 0.0
        %730 = vset.pattern.permute.xlu0 3
        %731 = vperm.xlu0 %730, %v359
        %v732 = vpop.permute.xlu0 %731
        %v734 = vunpack.c.l.s4 269488144
        %v735 = vunpack.c.0.s8 %v734
        %v736 = vperm.slane %v732, %v735
        %v738 = vunpack.c.l.s4 842150450
        %v739 = vunpack.c.0.s8 %v738
        %v740 = vperm.slane %v732, %v739
        %v742 = vunpack.c.l.s4 1414812756
        %v743 = vunpack.c.0.s8 %v742
        %v744 = vperm.slane %v732, %v743
        %v746 = vunpack.c.l.s4 1987475062
        %v747 = vunpack.c.0.s8 %v746
        %v748 = vperm.slane %v732, %v747
        %v749 = vrot.slane %v736, 1
        %v750 = vrot.slane %v740, 1
        %v751 = vrot.slane %v744, 1
        %v752 = vrot.slane %v748, 1
        %v761 = vmul.f32 %v722, %v736
        %v762 = vmul.f32 %v723, %v749
        %v763 = vmul.f32 %v724, %v740
        %v764 = vmul.f32 %v725, %v750
        %v765 = vmul.f32 %v726, %v744
        %v766 = vmul.f32 %v727, %v751
        %v767 = vmul.f32 %v728, %v748
        %v768 = vmul.f32 %v729, %v752
        %v769 = vadd.f32 %v669, %v761
        %v770 = vadd.f32 %v670, %v762
        %v771 = vadd.f32 %v671, %v763
        %v772 = vadd.f32 %v672, %v764
        %v773 = vadd.f32 %v673, %v765
        %v774 = vadd.f32 %v674, %v766
        %v775 = vadd.f32 %v675, %v767
        %v776 = vadd.f32 %v676, %v768
        %777 = vset.pattern.permute.xlu0 4
        %778 = vperm.xlu0 %777, %v359
        %v779 = vpop.permute.xlu0 %778
        %v781 = vmul.f32 %v448, %v779
        %v782 = vmul.f32 %v449, %v779
        %v783 = vmul.f32 %v450, %v779
        %v787 = vrot.slane %v782, 6
        %v788 = vrot.slane %v783, 4
        %v789 = vsel %vm369, %v781, %v787
        %v790 = vsel %vm464, %v789, %v788
        %v791 = vsel %vm371, %v781, %v787
        %v792 = vsel %vm467, %v791, %v788
        %v793 = vrot.slane %v792, 2
        %v794 = vsel %vm374, %v781, %v787
        %v795 = vsel %vm464, %v788, %v794
        %v796 = vrot.slane %v795, 4
        %v797 = vsel %vm377, %v787, %v781
        %v798 = vsel %vm467, %v788, %v797
        %v799 = vrot.slane %v798, 6
        %v800 = vrot.slane %v790, 1
        %v801 = vrot.slane %v793, 1
        %v802 = vrot.slane %v796, 1
        %v803 = vrot.slane %v799, 1
        %804 = vrot.lane.b32.xlu0 %v790, 111
        %v805 = vpop.permute.xlu0 %804
        %806 = vrot.lane.b32.xlu0 %v800, 111
        %v807 = vpop.permute.xlu0 %806
        %808 = vrot.lane.b32.xlu0 %v793, 111
        %v809 = vpop.permute.xlu0 %808
        %810 = vrot.lane.b32.xlu0 %v801, 111
        %v811 = vpop.permute.xlu0 %810
        %812 = vrot.lane.b32.xlu0 %v796, 111
        %v813 = vpop.permute.xlu0 %812
        %814 = vrot.lane.b32.xlu0 %v802, 111
        %v815 = vpop.permute.xlu0 %814
        %816 = vrot.lane.b32.xlu0 %v799, 111
        %v817 = vpop.permute.xlu0 %816
        %818 = vrot.lane.b32.xlu0 %v803, 111
        %v819 = vpop.permute.xlu0 %818
        %v820 = vrot.slane %v805, 2
        %v821 = vrot.slane %v807, 2
        %v822 = vrot.slane %v809, 2
        %v823 = vrot.slane %v811, 2
        %v824 = vrot.slane %v813, 2
        %v825 = vrot.slane %v815, 2
        %v826 = vrot.slane %v817, 2
        %v827 = vrot.slane %v819, 2
        %vm828 = vcmask 908288
        %v829 = vsel %vm828, %v805, %v820
        %v830 = vsel %vm828, %v807, %v821
        %v831 = vsel %vm828, %v809, %v822
        %v832 = vsel %vm828, %v811, %v823
        %v833 = vsel %vm828, %v813, %v824
        %v834 = vsel %vm828, %v815, %v825
        %v835 = vsel %vm828, %v817, %v826
        %v836 = vsel %vm828, %v819, %v827
        %v845 = vadd.f32 %v769, %v829
        %v846 = vadd.f32 %v770, %v830
        %v847 = vadd.f32 %v771, %v831
        %v848 = vadd.f32 %v772, %v832
        %v849 = vadd.f32 %v773, %v833
        %v850 = vadd.f32 %v774, %v834
        %v851 = vadd.f32 %v775, %v835
        %v852 = vadd.f32 %v776, %v836
        %853 = vrot.lane.b32.xlu0 %v545, 110
        %v854 = vpop.permute.xlu0 %853
        %855 = vrot.lane.b32.xlu0 %v535, 110
        %v856 = vpop.permute.xlu0 %855
        %857 = vrot.lane.b32.xlu0 %v546, 110
        %v858 = vpop.permute.xlu0 %857
        %859 = vrot.lane.b32.xlu0 %v538, 110
        %v860 = vpop.permute.xlu0 %859
        %861 = vrot.lane.b32.xlu0 %v547, 110
        %v862 = vpop.permute.xlu0 %861
        %863 = vrot.lane.b32.xlu0 %v541, 110
        %v864 = vpop.permute.xlu0 %863
        %865 = vrot.lane.b32.xlu0 %v548, 110
        %v866 = vpop.permute.xlu0 %865
        %867 = vrot.lane.b32.xlu0 %v544, 110
        %v868 = vpop.permute.xlu0 %867
        %v869 = vrot.slane %v854, 2
        %v870 = vrot.slane %v856, 2
        %v871 = vrot.slane %v858, 2
        %v872 = vrot.slane %v860, 2
        %v873 = vrot.slane %v862, 2
        %v874 = vrot.slane %v864, 2
        %v875 = vrot.slane %v866, 2
        %v876 = vrot.slane %v868, 2
        %vm877 = vcmask 900096
        %v878 = vsel %vm877, %v854, %v869
        %v879 = vsel %vm877, %v856, %v870
        %v880 = vsel %vm877, %v858, %v871
        %v881 = vsel %vm877, %v860, %v872
        %v882 = vsel %vm877, %v862, %v873
        %v883 = vsel %vm877, %v864, %v874
        %v884 = vsel %vm877, %v866, %v875
        %v885 = vsel %vm877, %v868, %v876
        %v894 = vsel %vm365, %v878, 0.0
        %v895 = vsel %vm365, %v879, 0.0
        %v896 = vsel %vm365, %v880, 0.0
        %v897 = vsel %vm365, %v881, 0.0
        %v898 = vsel %vm365, %v882, 0.0
        %v899 = vsel %vm365, %v883, 0.0
        %v900 = vsel %vm365, %v884, 0.0
        %v901 = vsel %vm365, %v885, 0.0
        %902 = vset.pattern.permute.xlu0 5
        %903 = vperm.xlu0 %902, %v359
        %v904 = vpop.permute.xlu0 %903
        %v906 = vunpack.c.l.s4 269488144
        %v907 = vunpack.c.0.s8 %v906
        %v908 = vperm.slane %v904, %v907
        %v910 = vunpack.c.l.s4 842150450
        %v911 = vunpack.c.0.s8 %v910
        %v912 = vperm.slane %v904, %v911
        %v914 = vunpack.c.l.s4 1414812756
        %v915 = vunpack.c.0.s8 %v914
        %v916 = vperm.slane %v904, %v915
        %v918 = vunpack.c.l.s4 1987475062
        %v919 = vunpack.c.0.s8 %v918
        %v920 = vperm.slane %v904, %v919
        %v921 = vrot.slane %v908, 7
        %v922 = vrot.slane %v912, 7
        %v923 = vrot.slane %v916, 7
        %v924 = vrot.slane %v920, 7
        %v933 = vmul.f32 %v894, %v921
        %v934 = vmul.f32 %v895, %v908
        %v935 = vmul.f32 %v896, %v922
        %v936 = vmul.f32 %v897, %v912
        %v937 = vmul.f32 %v898, %v923
        %v938 = vmul.f32 %v899, %v916
        %v939 = vmul.f32 %v900, %v924
        %v940 = vmul.f32 %v901, %v920
        %v949 = vrot.slane %v933, 7
        %v950 = vrot.slane %v949, 2
        %v951 = vrot.slane %v934, 7
        %v952 = vrot.slane %v951, 2
        %v953 = vrot.slane %v935, 7
        %v954 = vrot.slane %v953, 2
        %v955 = vrot.slane %v936, 7
        %v956 = vrot.slane %v955, 2
        %v957 = vrot.slane %v937, 7
        %v958 = vrot.slane %v957, 2
        %v959 = vrot.slane %v938, 7
        %v960 = vrot.slane %v959, 2
        %v961 = vrot.slane %v939, 7
        %v962 = vrot.slane %v961, 2
        %v963 = vrot.slane %v940, 7
        %v964 = vrot.slane %v963, 2
        %v973 = vadd.f32 %v845, %v950
        %v974 = vadd.f32 %v846, %v952
        %v975 = vadd.f32 %v847, %v954
        %v976 = vadd.f32 %v848, %v956
        %v977 = vadd.f32 %v849, %v958
        %v978 = vadd.f32 %v850, %v960
        %v979 = vadd.f32 %v851, %v962
        %v980 = vadd.f32 %v852, %v964
        %981 = vrot.lane.b32.xlu0 %v535, 96
        %v982 = vpop.permute.xlu0 %981
        %983 = vrot.lane.b32.xlu0 %v677, 96
        %v984 = vpop.permute.xlu0 %983
        %985 = vrot.lane.b32.xlu0 %v538, 96
        %v986 = vpop.permute.xlu0 %985
        %987 = vrot.lane.b32.xlu0 %v678, 96
        %v988 = vpop.permute.xlu0 %987
        %989 = vrot.lane.b32.xlu0 %v541, 96
        %v990 = vpop.permute.xlu0 %989
        %991 = vrot.lane.b32.xlu0 %v679, 96
        %v992 = vpop.permute.xlu0 %991
        %993 = vrot.lane.b32.xlu0 %v544, 96
        %v994 = vpop.permute.xlu0 %993
        %995 = vrot.lane.b32.xlu0 %v680, 96
        %v996 = vpop.permute.xlu0 %995
        %v997 = vrot.slane %v982, 2
        %v998 = vrot.slane %v984, 2
        %v999 = vrot.slane %v986, 2
        %v1000 = vrot.slane %v988, 2
        %v1001 = vrot.slane %v990, 2
        %v1002 = vrot.slane %v992, 2
        %v1003 = vrot.slane %v994, 2
        %v1004 = vrot.slane %v996, 2
        %vm1005 = vcmask 785408
        %v1006 = vsel %vm1005, %v982, %v997
        %v1007 = vsel %vm1005, %v984, %v998
        %v1008 = vsel %vm1005, %v986, %v999
        %v1009 = vsel %vm1005, %v988, %v1000
        %v1010 = vsel %vm1005, %v990, %v1001
        %v1011 = vsel %vm1005, %v992, %v1002
        %v1012 = vsel %vm1005, %v994, %v1003
        %v1013 = vsel %vm1005, %v996, %v1004
        %v1022 = vsel %vm365, %v1006, 0.0
        %v1023 = vsel %vm365, %v1007, 0.0
        %v1024 = vsel %vm365, %v1008, 0.0
        %v1025 = vsel %vm365, %v1009, 0.0
        %v1026 = vsel %vm365, %v1010, 0.0
        %v1027 = vsel %vm365, %v1011, 0.0
        %v1028 = vsel %vm365, %v1012, 0.0
        %v1029 = vsel %vm365, %v1013, 0.0
        %1030 = vset.pattern.permute.xlu0 6
        %1031 = vperm.xlu0 %1030, %v359
        %v1032 = vpop.permute.xlu0 %1031
        %v1034 = vunpack.c.l.s4 269488144
        %v1035 = vunpack.c.0.s8 %v1034
        %v1036 = vperm.slane %v1032, %v1035
        %v1038 = vunpack.c.l.s4 842150450
        %v1039 = vunpack.c.0.s8 %v1038
        %v1040 = vperm.slane %v1032, %v1039
        %v1042 = vunpack.c.l.s4 1414812756
        %v1043 = vunpack.c.0.s8 %v1042
        %v1044 = vperm.slane %v1032, %v1043
        %v1046 = vunpack.c.l.s4 1987475062
        %v1047 = vunpack.c.0.s8 %v1046
        %v1048 = vperm.slane %v1032, %v1047
        %v1049 = vrot.slane %v1036, 1
        %v1050 = vrot.slane %v1040, 1
        %v1051 = vrot.slane %v1044, 1
        %v1052 = vrot.slane %v1048, 1
        %v1061 = vmul.f32 %v1022, %v1036
        %v1062 = vmul.f32 %v1023, %v1049
        %v1063 = vmul.f32 %v1024, %v1040
        %v1064 = vmul.f32 %v1025, %v1050
        %v1065 = vmul.f32 %v1026, %v1044
        %v1066 = vmul.f32 %v1027, %v1051
        %v1067 = vmul.f32 %v1028, %v1048
        %v1068 = vmul.f32 %v1029, %v1052
        %v1069 = vadd.f32 %v973, %v1061
        %v1070 = vadd.f32 %v974, %v1062
        %v1071 = vadd.f32 %v975, %v1063
        %v1072 = vadd.f32 %v976, %v1064
        %v1073 = vadd.f32 %v977, %v1065
        %v1074 = vadd.f32 %v978, %v1066
        %v1075 = vadd.f32 %v979, %v1067
        %v1076 = vadd.f32 %v980, %v1068
        %1077 = vset.pattern.permute.xlu0 7
        %1078 = vperm.xlu0 %1077, %v359
        %v1079 = vpop.permute.xlu0 %1078
        %v1081 = vmul.f32 %v448, %v1079
        %v1082 = vmul.f32 %v449, %v1079
        %v1083 = vmul.f32 %v450, %v1079
        %v1087 = vrot.slane %v1082, 6
        %v1088 = vrot.slane %v1083, 4
        %v1089 = vsel %vm369, %v1081, %v1087
        %v1090 = vsel %vm464, %v1089, %v1088
        %v1091 = vsel %vm371, %v1081, %v1087
        %v1092 = vsel %vm467, %v1091, %v1088
        %v1093 = vrot.slane %v1092, 2
        %v1094 = vsel %vm374, %v1081, %v1087
        %v1095 = vsel %vm464, %v1088, %v1094
        %v1096 = vrot.slane %v1095, 4
        %v1097 = vsel %vm377, %v1087, %v1081
        %v1098 = vsel %vm467, %v1088, %v1097
        %v1099 = vrot.slane %v1098, 6
        %v1100 = vrot.slane %v1090, 1
        %v1101 = vrot.slane %v1093, 1
        %v1102 = vrot.slane %v1096, 1
        %v1103 = vrot.slane %v1099, 1
        %1104 = vrot.lane.b32.xlu0 %v1090, 95
        %v1105 = vpop.permute.xlu0 %1104
        %1106 = vrot.lane.b32.xlu0 %v1100, 95
        %v1107 = vpop.permute.xlu0 %1106
        %1108 = vrot.lane.b32.xlu0 %v1093, 95
        %v1109 = vpop.permute.xlu0 %1108
        %1110 = vrot.lane.b32.xlu0 %v1101, 95
        %v1111 = vpop.permute.xlu0 %1110
        %1112 = vrot.lane.b32.xlu0 %v1096, 95
        %v1113 = vpop.permute.xlu0 %1112
        %1114 = vrot.lane.b32.xlu0 %v1102, 95
        %v1115 = vpop.permute.xlu0 %1114
        %1116 = vrot.lane.b32.xlu0 %v1099, 95
        %v1117 = vpop.permute.xlu0 %1116
        %1118 = vrot.lane.b32.xlu0 %v1103, 95
        %v1119 = vpop.permute.xlu0 %1118
        %v1120 = vrot.slane %v1105, 2
        %v1121 = vrot.slane %v1107, 2
        %v1122 = vrot.slane %v1109, 2
        %v1123 = vrot.slane %v1111, 2
        %v1124 = vrot.slane %v1113, 2
        %v1125 = vrot.slane %v1115, 2
        %v1126 = vrot.slane %v1117, 2
        %v1127 = vrot.slane %v1119, 2
        %vm1128 = vcmask 777216
        %v1129 = vsel %vm1128, %v1105, %v1120
        %v1130 = vsel %vm1128, %v1107, %v1121
        %v1131 = vsel %vm1128, %v1109, %v1122
        %v1132 = vsel %vm1128, %v1111, %v1123
        %v1133 = vsel %vm1128, %v1113, %v1124
        %v1134 = vsel %vm1128, %v1115, %v1125
        %v1135 = vsel %vm1128, %v1117, %v1126
        %v1136 = vsel %vm1128, %v1119, %v1127
        %v1145 = vadd.f32 %v1069, %v1129
        %v1146 = vadd.f32 %v1070, %v1130
        %v1147 = vadd.f32 %v1071, %v1131
        %v1148 = vadd.f32 %v1072, %v1132
        %v1149 = vadd.f32 %v1073, %v1133
        %v1150 = vadd.f32 %v1074, %v1134
        %v1151 = vadd.f32 %v1075, %v1135
        %v1152 = vadd.f32 %v1076, %v1136
        %1153 = vrot.lane.b32.xlu0 %v545, 94
        %v1154 = vpop.permute.xlu0 %1153
        %1155 = vrot.lane.b32.xlu0 %v535, 94
        %v1156 = vpop.permute.xlu0 %1155
        %1157 = vrot.lane.b32.xlu0 %v546, 94
        %v1158 = vpop.permute.xlu0 %1157
        %1159 = vrot.lane.b32.xlu0 %v538, 94
        %v1160 = vpop.permute.xlu0 %1159
        %1161 = vrot.lane.b32.xlu0 %v547, 94
        %v1162 = vpop.permute.xlu0 %1161
        %1163 = vrot.lane.b32.xlu0 %v541, 94
        %v1164 = vpop.permute.xlu0 %1163
        %1165 = vrot.lane.b32.xlu0 %v548, 94
        %v1166 = vpop.permute.xlu0 %1165
        %1167 = vrot.lane.b32.xlu0 %v544, 94
        %v1168 = vpop.permute.xlu0 %1167
        %v1169 = vrot.slane %v1154, 2
        %v1170 = vrot.slane %v1156, 2
        %v1171 = vrot.slane %v1158, 2
        %v1172 = vrot.slane %v1160, 2
        %v1173 = vrot.slane %v1162, 2
        %v1174 = vrot.slane %v1164, 2
        %v1175 = vrot.slane %v1166, 2
        %v1176 = vrot.slane %v1168, 2
        %vm1177 = vcmask 769024
        %v1178 = vsel %vm1177, %v1154, %v1169
        %v1179 = vsel %vm1177, %v1156, %v1170
        %v1180 = vsel %vm1177, %v1158, %v1171
        %v1181 = vsel %vm1177, %v1160, %v1172
        %v1182 = vsel %vm1177, %v1162, %v1173
        %v1183 = vsel %vm1177, %v1164, %v1174
        %v1184 = vsel %vm1177, %v1166, %v1175
        %v1185 = vsel %vm1177, %v1168, %v1176
        %v1194 = vsel %vm365, %v1178, 0.0
        %v1195 = vsel %vm365, %v1179, 0.0
        %v1196 = vsel %vm365, %v1180, 0.0
        %v1197 = vsel %vm365, %v1181, 0.0
        %v1198 = vsel %vm365, %v1182, 0.0
        %v1199 = vsel %vm365, %v1183, 0.0
        %v1200 = vsel %vm365, %v1184, 0.0
        %v1201 = vsel %vm365, %v1185, 0.0
        %1202 = vset.pattern.permute.xlu0 8
        %1203 = vperm.xlu0 %1202, %v359
        %v1204 = vpop.permute.xlu0 %1203
        %v1206 = vunpack.c.l.s4 269488144
        %v1207 = vunpack.c.0.s8 %v1206
        %v1208 = vperm.slane %v1204, %v1207
        %v1210 = vunpack.c.l.s4 842150450
        %v1211 = vunpack.c.0.s8 %v1210
        %v1212 = vperm.slane %v1204, %v1211
        %v1214 = vunpack.c.l.s4 1414812756
        %v1215 = vunpack.c.0.s8 %v1214
        %v1216 = vperm.slane %v1204, %v1215
        %v1218 = vunpack.c.l.s4 1987475062
        %v1219 = vunpack.c.0.s8 %v1218
        %v1220 = vperm.slane %v1204, %v1219
        %v1221 = vrot.slane %v1208, 7
        %v1222 = vrot.slane %v1212, 7
        %v1223 = vrot.slane %v1216, 7
        %v1224 = vrot.slane %v1220, 7
        %v1233 = vmul.f32 %v1194, %v1221
        %v1234 = vmul.f32 %v1195, %v1208
        %v1235 = vmul.f32 %v1196, %v1222
        %v1236 = vmul.f32 %v1197, %v1212
        %v1237 = vmul.f32 %v1198, %v1223
        %v1238 = vmul.f32 %v1199, %v1216
        %v1239 = vmul.f32 %v1200, %v1224
        %v1240 = vmul.f32 %v1201, %v1220
        %v1249 = vrot.slane %v1233, 7
        %v1250 = vrot.slane %v1249, 2
        %v1251 = vrot.slane %v1234, 7
        %v1252 = vrot.slane %v1251, 2
        %v1253 = vrot.slane %v1235, 7
        %v1254 = vrot.slane %v1253, 2
        %v1255 = vrot.slane %v1236, 7
        %v1256 = vrot.slane %v1255, 2
        %v1257 = vrot.slane %v1237, 7
        %v1258 = vrot.slane %v1257, 2
        %v1259 = vrot.slane %v1238, 7
        %v1260 = vrot.slane %v1259, 2
        %v1261 = vrot.slane %v1239, 7
        %v1262 = vrot.slane %v1261, 2
        %v1263 = vrot.slane %v1240, 7
        %v1264 = vrot.slane %v1263, 2
        %v1273 = vadd.f32 %v1145, %v1250
        %v1274 = vadd.f32 %v1146, %v1252
        %v1275 = vadd.f32 %v1147, %v1254
        %v1276 = vadd.f32 %v1148, %v1256
        %v1277 = vadd.f32 %v1149, %v1258
        %v1278 = vadd.f32 %v1150, %v1260
        %v1279 = vadd.f32 %v1151, %v1262
        %v1280 = vadd.f32 %v1152, %v1264
        %v1281 = vld [vmem:[%s3] sm:$0xff]
        %1283 = vset.pattern.permute.xlu0 0
        %1284 = vperm.xlu0 %1283, %v1281
        %v1285 = vpop.permute.xlu0 %1284
        %v1287 = vunpack.c.l.s4 269488144
        %v1288 = vunpack.c.0.s8 %v1287
        %v1289 = vperm.slane %v1285, %v1288
        %v1291 = vunpack.c.l.s4 842150450
        %v1292 = vunpack.c.0.s8 %v1291
        %v1293 = vperm.slane %v1285, %v1292
        %v1295 = vunpack.c.l.s4 1414812756
        %v1296 = vunpack.c.0.s8 %v1295
        %v1297 = vperm.slane %v1285, %v1296
        %v1299 = vunpack.c.l.s4 1987475062
        %v1300 = vunpack.c.0.s8 %v1299
        %v1301 = vperm.slane %v1285, %v1300
        %v1302 = vrot.slane %v1289, 1
        %v1303 = vrot.slane %v1293, 1
        %v1304 = vrot.slane %v1297, 1
        %v1305 = vrot.slane %v1301, 1
        %v1314 = vadd.f32 %v1273, %v1289
        %v1315 = vadd.f32 %v1274, %v1302
        %v1316 = vadd.f32 %v1275, %v1293
        %v1317 = vadd.f32 %v1276, %v1303
        %v1318 = vadd.f32 %v1277, %v1297
        %v1319 = vadd.f32 %v1278, %v1304
        %v1320 = vadd.f32 %v1279, %v1301
        %v1321 = vadd.f32 %v1280, %v1305
        %v1330 = vperm.slane %v1314, 0
        %v1331 = vperm.slane %v1314, 2
        %v1332 = vperm.slane %v1315, 0
        %v1333 = vperm.slane %v1315, 2
        %v1334 = vperm.slane %v1316, 0
        %v1335 = vperm.slane %v1316, 2
        %v1336 = vperm.slane %v1317, 0
        %v1337 = vperm.slane %v1317, 2
        %v1338 = vperm.slane %v1318, 0
        %v1339 = vperm.slane %v1318, 2
        %v1340 = vperm.slane %v1319, 0
        %v1341 = vperm.slane %v1319, 2
        %v1342 = vperm.slane %v1320, 0
        %v1343 = vperm.slane %v1320, 2
        %v1344 = vperm.slane %v1321, 0
        %v1345 = vperm.slane %v1321, 2
        %vm1346 = vcmask 1041409
        %v1347 = vsel %vm1346, %v1332, %v1330
        %vm1348 = vcmask 1042434
        %v1349 = vsel %vm1348, %v1334, %v1347
        %vm1350 = vcmask 1043459
        %v1351 = vsel %vm1350, %v1336, %v1349
        %vm1352 = vcmask 1044484
        %v1353 = vsel %vm1352, %v1338, %v1351
        %vm1354 = vcmask 1045509
        %v1355 = vsel %vm1354, %v1340, %v1353
        %vm1356 = vcmask 1046534
        %v1357 = vsel %vm1356, %v1342, %v1355
        %vm1358 = vcmask 1047559
        %v1359 = vsel %vm1358, %v1344, %v1357
        %v1360 = vsel %vm1346, %v1333, %v1331
        %v1361 = vsel %vm1348, %v1335, %v1360
        %v1362 = vsel %vm1350, %v1337, %v1361
        %v1363 = vsel %vm1352, %v1339, %v1362
        %v1364 = vsel %vm1354, %v1341, %v1363
        %v1365 = vsel %vm1356, %v1343, %v1364
        %v1366 = vsel %vm1358, %v1345, %v1365
        %1369 = vst [vmem:[%s257] sm:$0xff] %v1359
        %1370 = vst [vmem:[%s257 + $0x8] sm:$0xff] %v1366
        %s1371 = sand.u32 %s154, 1
        %s1372 = scalar_lea.sflag [#allocation5], %s1371
        %s1373 = sand.u32 %s154, 1
        %s1374 = smul.addr %s1373, 16
        %s1375 = scalar_lea.vmem [#allocation6], %s1374
        // Predicated region
        $region45: #{tpu_custom_call.1} parent=39 // pred_check
          %p1376 = pneg %p164
        $region46: #{tpu_custom_call.1} parent=39 // pred_check_branch
          %1378 = sbr.rel (%p1376) target = $region48
        $region47: #{tpu_custom_call.1} parent=39 // pred_region
          %s1379 = smul.u32 2, %s25
          %1381 = vsyncadd %s1372, 0
          %s1382 = smul.addr %s24, 2
          %s1383 = sadd.s32 %s1379, %s1382
          %s1384 = smul.addr %s1383, 8
          %s1385 = scalar_lea.hbm %s5, %s1384
          %s1387 = sshll.u32 %s1375, 4
          %s1388 = int_to_ptr.vmem [resolvable:$true] %s1387
          %s1389 = sshll.u32 %s1385, 4
          %s1390 = int_to_ptr.hbm [resolvable:$true] %s1389
          %1392 = dma.vmem_to_hbm [thread:$0]  %s1388, 256, %s1390, %s1372
        $region48: #{tpu_custom_call.1} parent=39 // pred_fallthru
          _
      $region40: #{tpu_custom_call.1} parent=5 // pred_fallthru
        _
      %p1393 = scmp.le.s32.totalorder 2, %s15
      // Predicated region
      $region49: #{tpu_custom_call.1} parent=5 // pred_check
        %p1394 = pneg %p1393
      $region50: #{tpu_custom_call.1} parent=5 // pred_check_branch
        %1396 = sbr.rel (%p1394) target = $region52
      $region51: #{tpu_custom_call.1} parent=5 // pred_region
        %s1397 = ssub.s32 %s15, 2
        // Predicated region
        $region53: #{tpu_custom_call.1} parent=51 // pred_check
          %p1398 = pneg %p170
        $region54: #{tpu_custom_call.1} parent=51 // pred_check_branch
          %1400 = sbr.rel (%p1398) target = $region56
        $region55: #{tpu_custom_call.1} parent=51 // pred_region
          %s1401 = sand.u32 %s155, 1
          %s1402 = scalar_lea.sflag [#allocation5], %s1401
          %s1403 = sand.u32 %s155, 1
          %s1404 = smul.addr %s1403, 16
          %s1405 = scalar_lea.vmem [#allocation6], %s1404
          %1407 = dma.done %s1402, 256
        $region56: #{tpu_custom_call.1} parent=51 // pred_fallthru
          _
      $region52: #{tpu_custom_call.1} parent=5 // pred_fallthru
        _
    $region6: #{tpu_custom_call.1} parent=1 // loop_footer
      %s19 = sadd.s32 1, %s15
    $region7: #{tpu_custom_call.1} parent=1 // loop_footer_branch
      %14 = sbr.rel target = $region3
    $region8: #{tpu_custom_call.1} parent=1 // loop_exit
      _
    %1408 = vsyncpa [#allocation4], 1
    %s1409 = scalar_lea.sflag [#allocation4], 1
    %1410 = vsyncpa %s1409, 1
    %1411 = vsyncpa [#allocation5], 1
    %s1412 = scalar_lea.sflag [#allocation5], 1
    %1413 = vsyncpa %s1412, 1

</llo_original>
